<compile_context>
chip_gen: v7x
topology: tpu7x:2x2x1
jax: 0.10.0
libtpu: 0.0.40
codegen_flags: <defaults>
</compile_context>

<pallas_src>
import functools

import jax
import jax.numpy as jnp
from jax.experimental import pallas as pl
from jax.experimental.pallas import tpu as pltpu


# ---------------------------------------------------------------------------
# Kernels
# ---------------------------------------------------------------------------
def _domain_cls_eval_kernel(x_ref, w_ref, b_ref, o_ref):
    # (TB, H) @ (H, N) on the MXU, f32 accumulation; bias folded into epilogue.
    out = jnp.dot(x_ref[...], w_ref[...], preferred_element_type=jnp.float32)
    out = out + b_ref[...].astype(jnp.float32)
    o_ref[...] = out.astype(o_ref.dtype)


def _domain_cls_train_kernel(seed_ref, x_ref, w_ref, b_ref, o_ref, *,
                             dropout_rate: float):
    # Inverted dropout using the TPU hardware PRNG.  The keep-mask is applied
    # with a single select on the (TB, H) tile; the 1/(1-p) scale is folded
    # into the (TB, N) f32 epilogue (cheaper and numerically cleaner than
    # scaling in the activation dtype).
    x = x_ref[...]
    scale = 1.0
    if dropout_rate >= 1.0:
        # PyTorch semantics: p == 1 drops everything -> output is just bias.
        x = jnp.zeros_like(x)
    elif dropout_rate > 0.0:
        # Mix seed and tile index with a large odd constant so successive user
        # seeds / adjacent tiles don't produce correlated PRNG streams.
        pltpu.prng_seed(seed_ref[0] * jnp.int32(1000003) + pl.program_id(0))
        bits = pltpu.bitcast(pltpu.prng_random_bits(x.shape), jnp.uint32)
        # Note: threshold slightly under-drops only for p within 2^-32 of 1.0.
        threshold = jnp.uint32(min(int(dropout_rate * (2 ** 32)), 2 ** 32 - 1))
        keep = bits >= threshold
        x = jnp.where(keep, x, jnp.zeros_like(x))
        scale = 1.0 / (1.0 - dropout_rate)

    out = jnp.dot(x, w_ref[...], preferred_element_type=jnp.float32)
    out = out * jnp.float32(scale) + b_ref[...].astype(jnp.float32)
    o_ref[...] = out.astype(o_ref.dtype)


# ---------------------------------------------------------------------------
# Tiling / VMEM helpers
# ---------------------------------------------------------------------------
def _round_up(x: int, m: int) -> int:
    return ((x + m - 1) // m) * m


def _choose_batch_tile(B: int, H: int, dsize: int, *,
                       target_bytes: int = 4 << 20,
                       cap: int = 2048) -> int:
    """Pick the batch tile TB.

    ~target_bytes per x buffer amortises the ~0.35 us per-grid-step overhead;
    the cap keeps double-buffered tiles comfortably inside every chip's scoped
    VMEM (v5e 16 MiB default, v7x 64 MiB physical).  For batches that would fit
    in one tile but are big enough to matter, split into two balanced tiles so
    both v7x TensorCores get work; when the grid has >1 step, re-balance so the
    last tile is not a tiny remainder.
    """
    tb = max(8, (target_bytes // max(H * dsize, 1)) // 8 * 8)
    tb = min(tb, cap)

    if B <= tb:
        if B >= 128:
            # Force an even 2-step grid for megacore on v7x.
            tb = _round_up(pl.cdiv(B, 2), 8)
        else:
            tb = B  # single small tile; block equals full batch dim
    else:
        # Re-balance: avoid e.g. 512 + 88 style tails.
        n_steps = pl.cdiv(B, tb)
        tb = _round_up(pl.cdiv(B, n_steps), 8)
    return tb


def _vmem_limit_bytes(TB: int, H: int, N: int, in_dsize: int,
                      out_dsize: int) -> int:
    """Conservative scoped-VMEM budget for this kernel (with headroom)."""
    x_buf = _round_up(TB, 8) * _round_up(H, 128) * in_dsize
    w_buf = _round_up(H, 8) * _round_up(N, 128) * in_dsize
    b_buf = 8 * _round_up(N, 128) * in_dsize
    o_buf = _round_up(TB, 8) * _round_up(N, 128) * out_dsize
    # Streams (x, out) are double-buffered; weight/bias are resident.
    need = 2 * (x_buf + o_buf) + w_buf + b_buf
    return max(int(1.5 * need) + (1 << 20), 8 << 20)


# ---------------------------------------------------------------------------
# Wrapper
# ---------------------------------------------------------------------------
def domain_cls_forward(pooled_output, weight, bias, *,
                       dropout_rate: float = 0.1,
                       training: bool = False,
                       seed: int = 0):
    """pooled_output: (B, H); weight: (H, N); bias: (N,) -> scores (B, N)."""
    B, H = pooled_output.shape
    Hw, N = weight.shape
    assert H == Hw, (H, Hw)
    bias2d = bias.reshape(1, N)

    dsize = jnp.dtype(pooled_output.dtype).itemsize
    out_dtype = pooled_output.dtype
    out_dsize = jnp.dtype(out_dtype).itemsize

    TB = _choose_batch_tile(B, H, dsize)
    grid = (pl.cdiv(B, TB),)

    cost = pl.CostEstimate(
        flops=2 * B * H * N,
        transcendentals=0,
        bytes_accessed=B * H * dsize + H * N * dsize + B * N * out_dsize,
    )
    compiler_params = pltpu.CompilerParams(
        dimension_semantics=("parallel",),
        vmem_limit_bytes=_vmem_limit_bytes(TB, H, N, dsize, out_dsize),
    )
    out_shape = jax.ShapeDtypeStruct((B, N), out_dtype)

    if training and dropout_rate > 0.0:
        # Training path: seed lands in SMEM via scalar prefetch; each index_map
        # receives the prefetch ref as a trailing positional arg.
        seed_arr = jnp.array([seed], dtype=jnp.int32)
        kernel = functools.partial(_domain_cls_train_kernel,
                                   dropout_rate=float(dropout_rate))
        return pl.pallas_call(
            kernel,
            out_shape=out_shape,
            grid_spec=pltpu.PrefetchScalarGridSpec(
                num_scalar_prefetch=1,
                grid=grid,
                in_specs=[
                    pl.BlockSpec((TB, H), lambda i, seed_ref: (i, 0)),
                    pl.BlockSpec((H, N), lambda i, seed_ref: (0, 0)),
                    pl.BlockSpec((1, N), lambda i, seed_ref: (0, 0)),
                ],
                out_specs=pl.BlockSpec((TB, N), lambda i, seed_ref: (i, 0)),
            ),
            compiler_params=compiler_params,
            cost_estimate=cost,
        )(seed_arr, pooled_output, weight, bias2d)

    # Inference path (PyTorch model.eval()): dropout is the identity, and the
    # seed argument / SMEM prefetch is dropped entirely.
    return pl.pallas_call(
        _domain_cls_eval_kernel,
        out_shape=out_shape,
        grid=grid,
        in_specs=[
            pl.BlockSpec((TB, H), lambda i: (i, 0)),
            pl.BlockSpec((H, N), lambda i: (0, 0)),
            pl.BlockSpec((1, N), lambda i: (0, 0)),
        ],
        out_specs=pl.BlockSpec((TB, N), lambda i: (i, 0)),
        compiler_params=compiler_params,
        cost_estimate=cost,
    )(pooled_output, weight, bias2d)


# ---------------------------------------------------------------------------
# Self-test
# ---------------------------------------------------------------------------
if __name__ == "__main__":
    # Small shapes consistent with the module: batch=8, hidden=32, n_domain=4.
    B, H, N = 8, 32, 4
    dropout_p = 0.1

    key = jax.random.PRNGKey(0)
    kx, kw, kb = jax.random.split(key, 3)

    pooled_output = jax.random.normal(kx, (B, H), dtype=jnp.float32)
    # Deterministic parameter init (mimic nn.Linear uniform(-1/sqrt(H), 1/sqrt(H))).
    bound = 1.0 / (H ** 0.5)
    weight = jax.random.uniform(kw, (H, N), minval=-bound, maxval=bound,
                                dtype=jnp.float32)
    bias = jax.random.uniform(kb, (N,), minval=-bound, maxval=bound,
                              dtype=jnp.float32)

    # Eval-mode forward (dropout = identity), matching PyTorch model.eval().
    scores = domain_cls_forward(pooled_output, weight, bias,
                                dropout_rate=dropout_p, training=False)
    scores = jax.block_until_ready(scores)

    # Reference check in plain JAX.
    ref = pooled_output @ weight + bias
    assert scores.shape == (B, N)
    assert jnp.allclose(scores, ref, atol=1e-5, rtol=1e-5)

    # TODO(synk): training-mode dropout path (pltpu.prng_seed / prng_random_bits)
    # is implemented above but only statistically testable; it is not exercised
    # in this deterministic self-test.
    print("KERNEL_OK")
</pallas_src>

<mosaic_0001>
module attributes {stable_mosaic.version = 11 : i64} {
  func.func @_domain_cls_eval_kernel(%arg0: i32, %arg1: memref<8x32xf32, #tpu.memory_space<vmem>>, %arg2: memref<32x4xf32, #tpu.memory_space<vmem>>, %arg3: memref<1x4xf32, #tpu.memory_space<vmem>>, %arg4: memref<8x4xf32, #tpu.memory_space<vmem>>) attributes {dimension_semantics = [#tpu.dimension_semantics<parallel>], iteration_bounds = array<i64: 1>, scalar_prefetch = 0 : i64, scratch_operands = 0 : i64, tpu.core_type = #tpu.core_type<tc>, window_params = [{transform_indices = @transform_0, window_bounds = array<i64: 8, 32>}, {pipeline_mode = #tpu.pipeline_mode<synchronous>, transform_indices = @transform_1, window_bounds = array<i64: 32, 4>}, {pipeline_mode = #tpu.pipeline_mode<synchronous>, transform_indices = @transform_2, window_bounds = array<i64: 1, 4>}, {transform_indices = @transform_3, window_bounds = array<i64: 8, 4>}]} {
    %c0 = arith.constant 0 : index
    %c0_0 = arith.constant 0 : index
    %0 = vector.load %arg1[%c0, %c0_0] : memref<8x32xf32, #tpu.memory_space<vmem>>, vector<8x32xf32>
    %c0_1 = arith.constant 0 : index
    %c0_2 = arith.constant 0 : index
    %1 = vector.load %arg2[%c0_1, %c0_2] : memref<32x4xf32, #tpu.memory_space<vmem>>, vector<32x4xf32>
    %cst = arith.constant dense<0.000000e+00> : vector<8x4xf32>
    %2 = tpu.matmul %0, %1, %cst {dimension_numbers = #tpu.dot_dimension_numbers<[1], [0], [0], [1], [0, 0, 1, 1], [], []>} : vector<8x32xf32>, vector<32x4xf32>, vector<8x4xf32> -> vector<8x4xf32>
    %c0_3 = arith.constant 0 : index
    %c0_4 = arith.constant 0 : index
    %3 = vector.load %arg3[%c0_3, %c0_4] : memref<1x4xf32, #tpu.memory_space<vmem>>, vector<1x4xf32>
    %4 = vector.broadcast %3 : vector<1x4xf32> to vector<8x4xf32>
    %5 = arith.addf %2, %4 : vector<8x4xf32>
    %c0_5 = arith.constant 0 : index
    %c0_6 = arith.constant 0 : index
    %6 = vector.load %arg4[%c0_5, %c0_6] : memref<8x4xf32, #tpu.memory_space<vmem>>, vector<8x4xf32>
    tpu.vector_store %arg4[%c0_5, %c0_6], %5 {strides = array<i32>} : memref<8x4xf32, #tpu.memory_space<vmem>>, vector<8x4xf32>,
    return
  }
  func.func @transform_0(%arg0: i32) -> (i32, i32) {
    %c0_i32 = arith.constant 0 : i32
    %c0_i32_0 = arith.constant 0 : i32
    return %arg0, %c0_i32 : i32, i32
  }
  func.func @transform_1(%arg0: i32) -> (i32, i32) {
    %c0_i32 = arith.constant 0 : i32
    %c0_i32_0 = arith.constant 0 : i32
    %c0_i32_1 = arith.constant 0 : i32
    return %c0_i32, %c0_i32_0 : i32, i32
  }
  func.func @transform_2(%arg0: i32) -> (i32, i32) {
    %c0_i32 = arith.constant 0 : i32
    %c0_i32_0 = arith.constant 0 : i32
    %c0_i32_1 = arith.constant 0 : i32
    return %c0_i32, %c0_i32_0 : i32, i32
  }
  func.func @transform_3(%arg0: i32) -> (i32, i32) {
    %c0_i32 = arith.constant 0 : i32
    %c0_i32_0 = arith.constant 0 : i32
    return %arg0, %c0_i32 : i32, i32
  }
}

</mosaic_0001>

<llo_original>
// kernel: tpu_custom_call.1
$region0: #{tpu_custom_call.1}
  #allocation0 [shape = 'u32[]', space=smem, size = 0x4, offset = 0x4, fixed_abs, tag = 'smem constant byte address 0x4 - core index']
  #allocation1 [shape = 'u32[144,128]{1,0:T(1,128)}', space=vmem, size = 0x12000, scoped, tag = 'internal scratch']
  %s0 = inlined_call_operand.vmem [shape: f32[8,32], index: 0, kind: input, shape index: {}]
  %s1 = inlined_call_operand.vmem [shape: f32[32,4], index: 1, kind: input, shape index: {}]
  %s2 = inlined_call_operand.vmem [shape: f32[1,4], index: 2, kind: input, shape index: {}]
  %s3 = inlined_call_operand.vmem [shape: f32[8,4], index: 3, kind: output, shape index: {}]
  %s4 = sld [smem:[#allocation0]]
  $region22: #{tpu_custom_call.1} parent=0
    _
  %s6 = ssub.s32 1, %s4
  %s7 = scalar_select 0, %s6, %s4
  // Predicated region
  $region2: #{tpu_custom_call.1} parent=0 // pred_check
    _
  $region3: #{tpu_custom_call.1} parent=0 // pred_check_branch
    %9 = sbr.rel (0) target = $region5
  $region4: #{tpu_custom_call.1} parent=0 // pred_region
    _
  $region5: #{tpu_custom_call.1} parent=0 // pred_fallthru
    _
  // Predicated region
  $region6: #{tpu_custom_call.1} parent=0 // pred_check
    _
  $region7: #{tpu_custom_call.1} parent=0 // pred_check_branch
    %11 = sbr.rel (0) target = $region9
  $region8: #{tpu_custom_call.1} parent=0 // pred_region
    _
  $region9: #{tpu_custom_call.1} parent=0 // pred_fallthru
    _
  // Predicated region
  $region10: #{tpu_custom_call.1} parent=0 // pred_check
    _
  $region11: #{tpu_custom_call.1} parent=0 // pred_check_branch
    %13 = sbr.rel (0) target = $region13
  $region12: #{tpu_custom_call.1} parent=0 // pred_region
    _
  $region13: #{tpu_custom_call.1} parent=0 // pred_fallthru
    _
  %v14 = vld [vmem:[%s0] sm:$0xff]
  %v15 = vld [vmem:[%s1] sm:$0xff]
  %v16 = vld [vmem:[%s1 + $0x8] sm:$0xff]
  %v17 = vld [vmem:[%s1 + $0x10] sm:$0xff]
  %v18 = vld [vmem:[%s1 + $0x18] sm:$0xff]
  %v19 = vld [vmem:[%s2] sm:$0x1]
  %v21 = vlaneseq
  %v22 = vshrl.u32 %v21, 7
  %v23 = vsub.s32 0, %v22
  %v24 = vrot.slane %v19, %v23
  %vm26 = vcmask 261120
  %v28 = vsel %vm26, %v14, 0
  %30 = vmatprep.subr.mxu0 0.0
  %31 = vmatpush1.msra.mxu0 %v15
  %32 = vmatprep.subr.mxu0 0.0
  %33 = vmatpush1.msra.mxu0 %v16
  %34 = vmatprep.subr.mxu0 0.0
  %35 = vmatpush1.msra.mxu0 %v17
  %36 = vmatprep.subr.mxu0 0.0
  %37 = vmatpush1.msra.mxu0 %v18
  %38 = vmatprep.subr.mxu0 0.0
  %39 = vmatpush1.msra.mxu0 0.0
  %40 = vmatprep.subr.mxu0 0.0
  %41 = vmatpush1.msra.mxu0 0.0
  %42 = vmatprep.subr.mxu0 0.0
  %43 = vmatpush1.msra.mxu0 0.0
  %44 = vmatprep.subr.mxu0 0.0
  %45 = vmatpush1.msra.mxu0 0.0
  %46 = vmatprep.subr.mxu0 0.0
  %47 = vmatpush1.msra.mxu0 0.0
  %48 = vmatprep.subr.mxu0 0.0
  %49 = vmatpush1.msra.mxu0 0.0
  %50 = vmatprep.subr.mxu0 0.0
  %51 = vmatpush1.msra.mxu0 0.0
  %52 = vmatprep.subr.mxu0 0.0
  %53 = vmatpush1.msra.mxu0 0.0
  %54 = vmatprep.subr.mxu0 0.0
  %55 = vmatpush1.msra.mxu0 0.0
  %56 = vmatprep.subr.mxu0 0.0
  %57 = vmatpush1.msra.mxu0 0.0
  %58 = vmatprep.subr.mxu0 0.0
  %59 = vmatpush1.msra.mxu0 0.0
  %60 = vmatprep.subr.mxu0 0.0
  %61 = vmatpush1.msra.mxu0 0.0
  %62 = vmatprep.subr.mxu0 0.0
  %63 = vmatpush1.msra.mxu0 0.0
  %64 = vmatprep.subr.mxu0 0.0
  %65 = vmatpush1.msra.mxu0 0.0
  %66 = vmatprep.subr.mxu0 0.0
  %67 = vmatpush1.msra.mxu0 0.0
  %68 = vmatprep.subr.mxu0 0.0
  %69 = vmatpush1.msra.mxu0 0.0
  %70 = vmatprep.subr.mxu0 0.0
  %71 = vmatpush1.msra.mxu0 0.0
  %72 = vmatprep.subr.mxu0 0.0
  %73 = vmatpush1.msra.mxu0 0.0
  %74 = vmatprep.subr.mxu0 0.0
  %75 = vmatpush1.msra.mxu0 0.0
  %76 = vmatprep.subr.mxu0 0.0
  %77 = vmatpush1.msra.mxu0 0.0
  %78 = vmatprep.subr.mxu0 0.0
  %79 = vmatpush1.msra.mxu0 0.0
  %80 = vmatprep.subr.mxu0 0.0
  %81 = vmatpush1.msra.mxu0 0.0
  %82 = vmatprep.subr.mxu0 0.0
  %83 = vmatpush1.msra.mxu0 0.0
  %84 = vmatprep.subr.mxu0 0.0
  %85 = vmatpush1.msra.mxu0 0.0
  %86 = vmatprep.subr.mxu0 0.0
  %87 = vmatpush1.msra.mxu0 0.0
  %88 = vmatprep.subr.mxu0 0.0
  %89 = vmatpush1.msra.mxu0 0.0
  %90 = vmatprep.subr.mxu0 0.0
  %91 = vmatpush1.msra.mxu0 0.0
  %92 = vmatprep.subr.mxu0 0.0
  %93 = vmatpush1.msra.mxu0 0.0
  %94 = vmatprep.mubr.f32.mxu0 0.0
  %95 = vmatmul.mubr.f32.gmra.mrb[0].mxu0 %v28
  %v96 = vpop.f32.mrb[0].mxu0
  %v97 = vadd.f32 %v24, %v96
  %v98 = vpop.f32.mrb[0].mxu0
  %99 = vdwg.mxu0
  %vm100 = vcmask 31744
  %101 = vst.msk [vmem:[%s3] sm:$0xff] %vm100, %v97
  // Predicated region
  $region14: #{tpu_custom_call.1} parent=0 // pred_check
    _
  $region15: #{tpu_custom_call.1} parent=0 // pred_check_branch
    %103 = sbr.rel (0) target = $region17
  $region16: #{tpu_custom_call.1} parent=0 // pred_region
    _
  $region17: #{tpu_custom_call.1} parent=0 // pred_fallthru
    _
  // Predicated region
  $region18: #{tpu_custom_call.1} parent=0 // pred_check
    _
  $region19: #{tpu_custom_call.1} parent=0 // pred_check_branch
    %105 = sbr.rel (0) target = $region21
  $region20: #{tpu_custom_call.1} parent=0 // pred_region
    _
  $region21: #{tpu_custom_call.1} parent=0 // pred_fallthru
    _

</llo_original>
